<compile_context>
chip_gen: v7x
topology: tpu7x:2x2x1
jax: 0.10.0
libtpu: 0.0.40
codegen_flags: <defaults>
</compile_context>

<pallas_src>
import functools

import jax
import jax.numpy as jnp
from jax.experimental import pallas as pl
from jax.experimental.pallas import tpu as pltpu


def _mynet_kernel(ids_ref, table_ref, wconv_ref, bconv_ref, wout_ref, bout_ref,
                  out_ref, *, wid_size):
    L = ids_ref.shape[0]
    nwords, _ = table_ref.shape
    K = wid_size
    L_out = L - K + 1

    # ---- fused embedding gather: one-hot @ table on the MXU ----
    ids = ids_ref[...]                                               # (L, 1) int32
    vocab = jax.lax.broadcasted_iota(jnp.int32, (L, nwords), 1)      # (L, nwords)
    onehot = (vocab == ids).astype(table_ref.dtype)                  # (L, nwords)
    emb = jnp.dot(onehot, table_ref[...],
                  preferred_element_type=jnp.float32)                # (L, E)

    # ---- Conv1d (valid padding) as ONE im2col matmul ----
    im2col = jnp.concatenate([emb[k:k + L_out, :] for k in range(K)],
                             axis=1)                                 # (L_out, K*E)
    conv = jnp.dot(im2col, wconv_ref[...],
                   preferred_element_type=jnp.float32)               # (L_out, F)

    # ---- max over time, then bias (constant over time), then ReLU ----
    h = jnp.max(conv, axis=0, keepdims=True) + bconv_ref[...]        # (1, F)
    h = jnp.maximum(h, 0.0)

    # ---- final Linear into a lane-dense padded slab (1, 128) ----
    out_ref[...] = (
        jnp.dot(h, wout_ref[...], preferred_element_type=jnp.float32)
        + bout_ref[...]
    )


def mynet_forward_batched(x_ids, emb_table, w_conv, b_conv, w_out, b_out,
                          *, wid_size):
    """Forward for a batch of sentences x_ids: (B, L) int32. Returns (B, ntags)."""
    B, L = x_ids.shape
    K, E, F = w_conv.shape
    assert K == wid_size
    assert L >= K, "sequence length must be >= conv window size (L_out > 0)"
    nwords = emb_table.shape[0]
    ntags = w_out.shape[1]
    NPAD = max(128, ((ntags + 127) // 128) * 128)   # lane-dense output width

    # Wrapper-side layout plumbing (weights would normally be pre-packed once).
    ids3 = x_ids.astype(jnp.int32).reshape(B, L, 1)
    wconv_flat = w_conv.reshape(K * E, F)           # wconv_flat[k*E + c, f] = w_conv[k,c,f]
    wout_pad = jnp.zeros((F, NPAD), w_out.dtype).at[:, :ntags].set(w_out)
    bout_pad = jnp.zeros((1, NPAD), b_out.dtype).at[:, :ntags].set(b_out)

    kernel = functools.partial(_mynet_kernel, wid_size=K)

    out_pad = pl.pallas_call(
        kernel,
        out_shape=jax.ShapeDtypeStruct((B, 1, NPAD), jnp.float32),
        grid=(B,),
        in_specs=[
            pl.BlockSpec((None, L, 1), lambda b: (b, 0, 0)),     # ids (per sentence)
            pl.BlockSpec((nwords, E), lambda b: (0, 0)),         # embedding table
            pl.BlockSpec((K * E, F), lambda b: (0, 0)),          # flattened conv weight
            pl.BlockSpec((1, F), lambda b: (0, 0)),              # conv bias
            pl.BlockSpec((F, NPAD), lambda b: (0, 0)),           # padded out weight
            pl.BlockSpec((1, NPAD), lambda b: (0, 0)),           # padded out bias
        ],
        out_specs=pl.BlockSpec((None, 1, NPAD), lambda b: (b, 0, 0)),
        compiler_params=pltpu.CompilerParams(
            dimension_semantics=("parallel",)),                  # megacore on v7x
    )(ids3, emb_table, wconv_flat, b_conv, wout_pad, bout_pad)

    return out_pad[:, 0, :ntags]                                 # (B, ntags)


def mynet_forward(x_ids, emb_table, w_conv, b_conv, w_out, b_out, *, wid_size):
    """Forward matching MY_NET.forward for a 1-D LongTensor of word ids: (1, ntags)."""
    return mynet_forward_batched(x_ids[None, :], emb_table, w_conv, b_conv,
                                 w_out, b_out, wid_size=wid_size)


def _reference_forward(x_ids, emb_table, w_conv, b_conv, w_out, b_out):
    """Pure-JAX reference mirroring the PyTorch forward (single sentence)."""
    emb = jnp.take(emb_table, x_ids, axis=0)                     # (L, E)
    K = w_conv.shape[0]
    L_out = emb.shape[0] - K + 1
    conv = jnp.zeros((L_out, w_conv.shape[2]), jnp.float32) + b_conv
    for k in range(K):
        conv = conv + emb[k:k + L_out, :] @ w_conv[k]
    h = jnp.maximum(jnp.max(conv, axis=0, keepdims=True), 0.0)
    return h @ w_out + b_out                                     # (1, ntags)


if __name__ == "__main__":
    # Small, deterministic problem sizes consistent with the module.
    nwords = 100
    emb_size = 32
    ntags = 5
    wid_size = 3
    num_filters = 16
    seq_len = 20
    batch = 4

    key = jax.random.PRNGKey(0)
    k_emb, k_wc, k_bc, k_wo, k_bo, k_x = jax.random.split(key, 6)

    # Parameter init (mirrors nn.init.uniform_(-0.25, 0.25)).
    emb_table = jax.random.uniform(k_emb, (nwords, emb_size), jnp.float32, -0.25, 0.25)
    w_conv = jax.random.uniform(k_wc, (wid_size, emb_size, num_filters),
                                jnp.float32, -0.25, 0.25)   # PyTorch (F,E,K) -> (K,E,F)
    b_conv = jax.random.uniform(k_bc, (1, num_filters), jnp.float32, -0.25, 0.25)
    w_out = jax.random.uniform(k_wo, (num_filters, ntags), jnp.float32, -0.25, 0.25)
    b_out = jax.random.uniform(k_bo, (1, ntags), jnp.float32, -0.25, 0.25)

    # A batch of sentences of word ids.
    x_batch = jax.random.randint(k_x, (batch, seq_len), 0, nwords, dtype=jnp.int32)

    # Batched Pallas forward.
    out_b = mynet_forward_batched(x_batch, emb_table, w_conv, b_conv, w_out, b_out,
                                  wid_size=wid_size)
    out_b = jax.block_until_ready(out_b)
    assert out_b.shape == (batch, ntags)

    # Single-sentence forward (matches PyTorch MY_NET.forward output shape).
    out_1 = mynet_forward(x_batch[0], emb_table, w_conv, b_conv, w_out, b_out,
                          wid_size=wid_size)
    out_1 = jax.block_until_ready(out_1)
    assert out_1.shape == (1, ntags)

    # Check against the pure-JAX reference, sentence by sentence.
    for i in range(batch):
        ref_i = _reference_forward(x_batch[i], emb_table, w_conv, b_conv, w_out, b_out)
        assert jnp.allclose(out_b[i:i + 1], ref_i, atol=1e-5, rtol=1e-5), (i, out_b[i], ref_i)
    ref_0 = _reference_forward(x_batch[0], emb_table, w_conv, b_conv, w_out, b_out)
    assert jnp.allclose(out_1, ref_0, atol=1e-5, rtol=1e-5), (out_1, ref_0)

    print("KERNEL_OK")
</pallas_src>

<mosaic_0001>
module attributes {stable_mosaic.version = 11 : i64} {
  func.func @_mynet_kernel(%arg0: i32, %arg1: memref<1x20x1xi32, #tpu.memory_space<vmem>>, %arg2: memref<100x32xf32, #tpu.memory_space<vmem>>, %arg3: memref<96x16xf32, #tpu.memory_space<vmem>>, %arg4: memref<1x16xf32, #tpu.memory_space<vmem>>, %arg5: memref<16x128xf32, #tpu.memory_space<vmem>>, %arg6: memref<1x128xf32, #tpu.memory_space<vmem>>, %arg7: memref<1x1x128xf32, #tpu.memory_space<vmem>>) attributes {dimension_semantics = [#tpu.dimension_semantics<parallel>], iteration_bounds = array<i64: 4>, scalar_prefetch = 0 : i64, scratch_operands = 0 : i64, tpu.core_type = #tpu.core_type<tc>, window_params = [{transform_indices = @transform_0, window_bounds = array<i64: 1, 20, 1>}, {pipeline_mode = #tpu.pipeline_mode<synchronous>, transform_indices = @transform_1, window_bounds = array<i64: 100, 32>}, {pipeline_mode = #tpu.pipeline_mode<synchronous>, transform_indices = @transform_2, window_bounds = array<i64: 96, 16>}, {pipeline_mode = #tpu.pipeline_mode<synchronous>, transform_indices = @transform_3, window_bounds = array<i64: 1, 16>}, {pipeline_mode = #tpu.pipeline_mode<synchronous>, transform_indices = @transform_4, window_bounds = array<i64: 16, 128>}, {pipeline_mode = #tpu.pipeline_mode<synchronous>, transform_indices = @transform_5, window_bounds = array<i64: 1, 128>}, {transform_indices = @transform_6, window_bounds = array<i64: 1, 1, 128>}]} {
    %c0 = arith.constant 0 : index
    %c0_0 = arith.constant 0 : index
    %c0_1 = arith.constant 0 : index
    %0 = vector.load %arg1[%c0, %c0_0, %c0_1] : memref<1x20x1xi32, #tpu.memory_space<vmem>>, vector<1x20x1xi32>
    %1 = vector.shape_cast %0 : vector<1x20x1xi32> to vector<20x1xi32>
    %2 = tpu.iota {dimensions = array<i32: 1>} : vector<20x100xi32>
    %3 = vector.broadcast %1 : vector<20x1xi32> to vector<20x100xi32>
    %4 = arith.cmpi eq, %2, %3 : vector<20x100xi32>
    %5 = arith.extui %4 : vector<20x100xi1> to vector<20x100xi32>
    %6 = arith.sitofp %5 : vector<20x100xi32> to vector<20x100xf32>
    %c0_2 = arith.constant 0 : index
    %c0_3 = arith.constant 0 : index
    %7 = vector.load %arg2[%c0_2, %c0_3] : memref<100x32xf32, #tpu.memory_space<vmem>>, vector<100x32xf32>
    %cst = arith.constant dense<0.000000e+00> : vector<20x32xf32>
    %8 = tpu.matmul %6, %7, %cst {dimension_numbers = #tpu.dot_dimension_numbers<[1], [0], [0], [1], [0, 0, 1, 1], [], []>} : vector<20x100xf32>, vector<100x32xf32>, vector<20x32xf32> -> vector<20x32xf32>
    %9 = vector.extract_strided_slice %8 {offsets = [0, 0], sizes = [18, 32], strides = [1, 1]} : vector<20x32xf32> to vector<18x32xf32>
    %10 = vector.extract_strided_slice %8 {offsets = [1, 0], sizes = [18, 32], strides = [1, 1]} : vector<20x32xf32> to vector<18x32xf32>
    %11 = vector.extract_strided_slice %8 {offsets = [2, 0], sizes = [18, 32], strides = [1, 1]} : vector<20x32xf32> to vector<18x32xf32>
    %12 = tpu.concatenate %9, %10, %11 in 1 : vector<18x32xf32>, vector<18x32xf32>, vector<18x32xf32> -> vector<18x96xf32>
    %c0_4 = arith.constant 0 : index
    %c0_5 = arith.constant 0 : index
    %13 = vector.load %arg3[%c0_4, %c0_5] : memref<96x16xf32, #tpu.memory_space<vmem>>, vector<96x16xf32>
    %cst_6 = arith.constant dense<0.000000e+00> : vector<18x16xf32>
    %14 = tpu.matmul %12, %13, %cst_6 {dimension_numbers = #tpu.dot_dimension_numbers<[1], [0], [0], [1], [0, 0, 1, 1], [], []>} : vector<18x96xf32>, vector<96x16xf32>, vector<18x16xf32> -> vector<18x16xf32>
    %cst_7 = arith.constant dense<0xFF800000> : vector<16xf32>
    %15 = vector.multi_reduction <maximumf>, %14, %cst_7 [0] : vector<18x16xf32> to vector<16xf32>
    %16 = vector.shape_cast %15 : vector<16xf32> to vector<1x16xf32>
    %c0_8 = arith.constant 0 : index
    %c0_9 = arith.constant 0 : index
    %17 = vector.load %arg4[%c0_8, %c0_9] : memref<1x16xf32, #tpu.memory_space<vmem>>, vector<1x16xf32>
    %18 = arith.addf %16, %17 : vector<1x16xf32>
    %cst_10 = arith.constant 0.000000e+00 : f32
    %19 = vector.broadcast %cst_10 : f32 to vector<1x16xf32>
    %20 = arith.maximumf %18, %19 : vector<1x16xf32>
    %c0_11 = arith.constant 0 : index
    %c0_12 = arith.constant 0 : index
    %21 = vector.load %arg5[%c0_11, %c0_12] : memref<16x128xf32, #tpu.memory_space<vmem>>, vector<16x128xf32>
    %cst_13 = arith.constant dense<0.000000e+00> : vector<1x128xf32>
    %22 = tpu.matmul %20, %21, %cst_13 {dimension_numbers = #tpu.dot_dimension_numbers<[1], [0], [0], [1], [0, 0, 1, 1], [], []>} : vector<1x16xf32>, vector<16x128xf32>, vector<1x128xf32> -> vector<1x128xf32>
    %c0_14 = arith.constant 0 : index
    %c0_15 = arith.constant 0 : index
    %23 = vector.load %arg6[%c0_14, %c0_15] : memref<1x128xf32, #tpu.memory_space<vmem>>, vector<1x128xf32>
    %24 = arith.addf %22, %23 : vector<1x128xf32>
    %c0_16 = arith.constant 0 : index
    %c0_17 = arith.constant 0 : index
    %c0_18 = arith.constant 0 : index
    %25 = vector.load %arg7[%c0_16, %c0_17, %c0_18] : memref<1x1x128xf32, #tpu.memory_space<vmem>>, vector<1x1x128xf32>
    %26 = vector.shape_cast %25 : vector<1x1x128xf32> to vector<1x128xf32>
    %27 = vector.shape_cast %24 : vector<1x128xf32> to vector<1x1x128xf32>
    tpu.vector_store %arg7[%c0_16, %c0_17, %c0_18], %27 {strides = array<i32>} : memref<1x1x128xf32, #tpu.memory_space<vmem>>, vector<1x1x128xf32>,
    return
  }
  func.func @transform_0(%arg0: i32) -> (i32, i32, i32) {
    %c0_i32 = arith.constant 0 : i32
    %c0_i32_0 = arith.constant 0 : i32
    %c0_i32_1 = arith.constant 0 : i32
    return %arg0, %c0_i32, %c0_i32_0 : i32, i32, i32
  }
  func.func @transform_1(%arg0: i32) -> (i32, i32) {
    %c0_i32 = arith.constant 0 : i32
    %c0_i32_0 = arith.constant 0 : i32
    %c0_i32_1 = arith.constant 0 : i32
    return %c0_i32, %c0_i32_0 : i32, i32
  }
  func.func @transform_2(%arg0: i32) -> (i32, i32) {
    %c0_i32 = arith.constant 0 : i32
    %c0_i32_0 = arith.constant 0 : i32
    %c0_i32_1 = arith.constant 0 : i32
    return %c0_i32, %c0_i32_0 : i32, i32
  }
  func.func @transform_3(%arg0: i32) -> (i32, i32) {
    %c0_i32 = arith.constant 0 : i32
    %c0_i32_0 = arith.constant 0 : i32
    %c0_i32_1 = arith.constant 0 : i32
    return %c0_i32, %c0_i32_0 : i32, i32
  }
  func.func @transform_4(%arg0: i32) -> (i32, i32) {
    %c0_i32 = arith.constant 0 : i32
    %c0_i32_0 = arith.constant 0 : i32
    %c0_i32_1 = arith.constant 0 : i32
    return %c0_i32, %c0_i32_0 : i32, i32
  }
  func.func @transform_5(%arg0: i32) -> (i32, i32) {
    %c0_i32 = arith.constant 0 : i32
    %c0_i32_0 = arith.constant 0 : i32
    %c0_i32_1 = arith.constant 0 : i32
    return %c0_i32, %c0_i32_0 : i32, i32
  }
  func.func @transform_6(%arg0: i32) -> (i32, i32, i32) {
    %c0_i32 = arith.constant 0 : i32
    %c0_i32_0 = arith.constant 0 : i32
    %c0_i32_1 = arith.constant 0 : i32
    return %arg0, %c0_i32, %c0_i32_0 : i32, i32, i32
  }
}

</mosaic_0001>

<llo_original>
// kernel: tpu_custom_call.1
$region0: #{tpu_custom_call.1}
  #allocation0 [shape = 'u32[]', space=smem, size = 0x4, offset = 0x4, fixed_abs, tag = 'smem constant byte address 0x4 - core index']
  #allocation1 [shape = 'u32[144,128]{1,0:T(1,128)}', space=vmem, size = 0x12000, scoped, tag = 'internal scratch']
  %s0 = inlined_call_operand.vmem [shape: s32[4,20,1], index: 0, kind: input, shape index: {}]
  %s1 = inlined_call_operand.vmem [shape: f32[100,32], index: 1, kind: input, shape index: {}]
  %s2 = inlined_call_operand.vmem [shape: f32[96,16], index: 2, kind: input, shape index: {}]
  %s3 = inlined_call_operand.vmem [shape: f32[1,16], index: 3, kind: input, shape index: {}]
  %s4 = inlined_call_operand.vmem [shape: f32[16,128], index: 4, kind: input, shape index: {}]
  %s5 = inlined_call_operand.vmem [shape: f32[1,128], index: 5, kind: input, shape index: {}]
  %s6 = inlined_call_operand.hbm [shape: f32[4,1,128], index: 6, kind: output, shape index: {}]
  %s7 = sld [smem:[#allocation0]]
  $region57: #{tpu_custom_call.1} parent=0
    _
  %s9 = ssub.s32 1, %s7
  %s10 = scalar_select 0, %s9, %s7
  $region1: #{tpu_custom_call.1} parent=0
    #allocation2 [shape = 'u8[1024]{0}', space=vmem, size = 0x400, scoped, tag = 'output window, operand 0']
    #allocation3 [shape = 's32[2]{0}', space=sflag, size = 0x8, scoped, tag = 'scoped memory for tpu_custom_call.1']
    %11 = vsyncpa [#allocation3], 0
    %s12 = scalar_lea.sflag [#allocation3], 1
    %13 = vsyncpa %s12, 0
    loop: start=0, step=1, limit=6
    $region2: #{tpu_custom_call.1} parent=1 // loop_pre_header
      _
    $region3: #{tpu_custom_call.1} parent=1 // loop_header
      %s15 = sphi 0, %s19
      %p16 = scmp.ge.s32.totalorder %s15, 6
      %s25 = sphi 0, %s27
      %s28 = sphi 0, %s25
      %s29 = sphi 0, %s28
      %s45 = sphi 0, %s29
      %s49 = sphi 0, %s49
      %s51 = sphi 0, %s49
      %s52 = sphi 0, %s51
      %s66 = sphi 0, %s52
      %s70 = sphi 0, %s70
      %s72 = sphi 0, %s70
      %s73 = sphi 0, %s72
      %s87 = sphi 0, %s73
      %s91 = sphi 0, %s91
      %s93 = sphi 0, %s91
      %s94 = sphi 0, %s93
      %s108 = sphi 0, %s94
      %s112 = sphi 0, %s112
      %s114 = sphi 0, %s112
      %s115 = sphi 0, %s114
      %s129 = sphi 0, %s115
      %s133 = sphi 0, %s133
      %s135 = sphi 0, %s133
      %s136 = sphi 0, %s135
      %s150 = sphi 0, %s136
      %s156 = sphi 0, %s158
      %s159 = sphi 0, %s156
      %s160 = sphi 0, %s159
      %s176 = sphi 0, %s160
    $region4: #{tpu_custom_call.1} parent=1 // loop_header_branch
      %18 = sbr.rel (%p16) target = $region8
    $region5: #{tpu_custom_call.1} parent=1 // loop_body
      %s20 = ssub.s32 %s15, 1
      %s21 = ssub.s32 %s15, 2
      %s22 = sadd.s32 %s15, 1
      %s23 = ssub.s32 %s15, %s22
      %p24 = scmp.eq.s32.totalorder %s23, 0
      %s26 = sadd.s32 %s25, 1
      %s27 = scalar_select %p24, %s25, %s26
      %p30 = pneg %p24
      %p31 = scmp.eq.s32.totalorder %s15, 3
      %p32 = por %p30, %p31
      %p33 = scmp.ne.s32.totalorder %s25, %s28
      %p34 = scmp.eq.s32.totalorder %s15, 0
      %p35 = por %p33, %p34
      %p36 = scmp.ne.s32.totalorder %s25, %s28
      %p37 = scmp.eq.s32.totalorder %s20, 3
      %p38 = por %p36, %p37
      %p39 = scmp.ne.s32.totalorder %s28, %s29
      %p40 = scmp.eq.s32.totalorder %s20, 0
      %p41 = por %p39, %p40
      %p42 = scmp.ne.s32.totalorder %s28, %s29
      %p43 = scmp.eq.s32.totalorder %s21, 3
      %p44 = por %p42, %p43
      %p46 = scmp.ne.s32.totalorder %s29, %s45
      %p47 = scmp.eq.s32.totalorder %s21, 0
      %p48 = por %p46, %p47
      %s50 = sadd.s32 %s49, 1
      %p53 = scmp.eq.s32.totalorder %s15, 3
      %p54 = scmp.ne.s32.totalorder %s49, %s51
      %p55 = scmp.eq.s32.totalorder %s15, 0
      %p56 = por %p54, %p55
      %p57 = scmp.ne.s32.totalorder %s49, %s51
      %p58 = scmp.eq.s32.totalorder %s20, 3
      %p59 = por %p57, %p58
      %p60 = scmp.ne.s32.totalorder %s51, %s52
      %p61 = scmp.eq.s32.totalorder %s20, 0
      %p62 = por %p60, %p61
      %p63 = scmp.ne.s32.totalorder %s51, %s52
      %p64 = scmp.eq.s32.totalorder %s21, 3
      %p65 = por %p63, %p64
      %p67 = scmp.ne.s32.totalorder %s52, %s66
      %p68 = scmp.eq.s32.totalorder %s21, 0
      %p69 = por %p67, %p68
      %s71 = sadd.s32 %s70, 1
      %p74 = scmp.eq.s32.totalorder %s15, 3
      %p75 = scmp.ne.s32.totalorder %s70, %s72
      %p76 = scmp.eq.s32.totalorder %s15, 0
      %p77 = por %p75, %p76
      %p78 = scmp.ne.s32.totalorder %s70, %s72
      %p79 = scmp.eq.s32.totalorder %s20, 3
      %p80 = por %p78, %p79
      %p81 = scmp.ne.s32.totalorder %s72, %s73
      %p82 = scmp.eq.s32.totalorder %s20, 0
      %p83 = por %p81, %p82
      %p84 = scmp.ne.s32.totalorder %s72, %s73
      %p85 = scmp.eq.s32.totalorder %s21, 3
      %p86 = por %p84, %p85
      %p88 = scmp.ne.s32.totalorder %s73, %s87
      %p89 = scmp.eq.s32.totalorder %s21, 0
      %p90 = por %p88, %p89
      %s92 = sadd.s32 %s91, 1
      %p95 = scmp.eq.s32.totalorder %s15, 3
      %p96 = scmp.ne.s32.totalorder %s91, %s93
      %p97 = scmp.eq.s32.totalorder %s15, 0
      %p98 = por %p96, %p97
      %p99 = scmp.ne.s32.totalorder %s91, %s93
      %p100 = scmp.eq.s32.totalorder %s20, 3
      %p101 = por %p99, %p100
      %p102 = scmp.ne.s32.totalorder %s93, %s94
      %p103 = scmp.eq.s32.totalorder %s20, 0
      %p104 = por %p102, %p103
      %p105 = scmp.ne.s32.totalorder %s93, %s94
      %p106 = scmp.eq.s32.totalorder %s21, 3
      %p107 = por %p105, %p106
      %p109 = scmp.ne.s32.totalorder %s94, %s108
      %p110 = scmp.eq.s32.totalorder %s21, 0
      %p111 = por %p109, %p110
      %s113 = sadd.s32 %s112, 1
      %p116 = scmp.eq.s32.totalorder %s15, 3
      %p117 = scmp.ne.s32.totalorder %s112, %s114
      %p118 = scmp.eq.s32.totalorder %s15, 0
      %p119 = por %p117, %p118
      %p120 = scmp.ne.s32.totalorder %s112, %s114
      %p121 = scmp.eq.s32.totalorder %s20, 3
      %p122 = por %p120, %p121
      %p123 = scmp.ne.s32.totalorder %s114, %s115
      %p124 = scmp.eq.s32.totalorder %s20, 0
      %p125 = por %p123, %p124
      %p126 = scmp.ne.s32.totalorder %s114, %s115
      %p127 = scmp.eq.s32.totalorder %s21, 3
      %p128 = por %p126, %p127
      %p130 = scmp.ne.s32.totalorder %s115, %s129
      %p131 = scmp.eq.s32.totalorder %s21, 0
      %p132 = por %p130, %p131
      %s134 = sadd.s32 %s133, 1
      %p137 = scmp.eq.s32.totalorder %s15, 3
      %p138 = scmp.ne.s32.totalorder %s133, %s135
      %p139 = scmp.eq.s32.totalorder %s15, 0
      %p140 = por %p138, %p139
      %p141 = scmp.ne.s32.totalorder %s133, %s135
      %p142 = scmp.eq.s32.totalorder %s20, 3
      %p143 = por %p141, %p142
      %p144 = scmp.ne.s32.totalorder %s135, %s136
      %p145 = scmp.eq.s32.totalorder %s20, 0
      %p146 = por %p144, %p145
      %p147 = scmp.ne.s32.totalorder %s135, %s136
      %p148 = scmp.eq.s32.totalorder %s21, 3
      %p149 = por %p147, %p148
      %p151 = scmp.ne.s32.totalorder %s136, %s150
      %p152 = scmp.eq.s32.totalorder %s21, 0
      %p153 = por %p151, %p152
      %s154 = ssub.s32 %s15, %s22
      %p155 = scmp.eq.s32.totalorder %s154, 0
      %s157 = sadd.s32 %s156, 1
      %s158 = scalar_select %p155, %s156, %s157
      %p161 = pneg %p155
      %p162 = scmp.eq.s32.totalorder %s15, 3
      %p163 = por %p161, %p162
      %p164 = scmp.ne.s32.totalorder %s156, %s159
      %p165 = scmp.eq.s32.totalorder %s15, 0
      %p166 = por %p164, %p165
      %p167 = scmp.ne.s32.totalorder %s156, %s159
      %p168 = scmp.eq.s32.totalorder %s20, 3
      %p169 = por %p167, %p168
      %p170 = scmp.ne.s32.totalorder %s159, %s160
      %p171 = scmp.eq.s32.totalorder %s20, 0
      %p172 = por %p170, %p171
      %p173 = scmp.ne.s32.totalorder %s159, %s160
      %p174 = scmp.eq.s32.totalorder %s21, 3
      %p175 = por %p173, %p174
      %p177 = scmp.ne.s32.totalorder %s160, %s176
      %p178 = scmp.eq.s32.totalorder %s21, 0
      %p179 = por %p177, %p178
      %p180 = scmp.le.s32.totalorder 1, %s15
      %p181 = scmp.lt.s32.totalorder %s15, 5
      %p182 = pnand %p180, %p181
      %p183 = pneg %p182
      // Predicated region
      $region9: #{tpu_custom_call.1} parent=5 // pred_check
        _
      $region10: #{tpu_custom_call.1} parent=5 // pred_check_branch
        %185 = sbr.rel (%p182) target = $region12
      $region11: #{tpu_custom_call.1} parent=5 // pred_region
        %s186 = ssub.s32 %s15, 1
        // Predicated region
        $region13: #{tpu_custom_call.1} parent=11 // pred_check
          %p187 = pneg %p62
        $region14: #{tpu_custom_call.1} parent=11 // pred_check_branch
          %189 = sbr.rel (%p187) target = $region16
        $region15: #{tpu_custom_call.1} parent=11 // pred_region
          _
        $region16: #{tpu_custom_call.1} parent=11 // pred_fallthru
          _
        // Predicated region
        $region17: #{tpu_custom_call.1} parent=11 // pred_check
          %p190 = pneg %p83
        $region18: #{tpu_custom_call.1} parent=11 // pred_check_branch
          %192 = sbr.rel (%p190) target = $region20
        $region19: #{tpu_custom_call.1} parent=11 // pred_region
          _
        $region20: #{tpu_custom_call.1} parent=11 // pred_fallthru
          _
        // Predicated region
        $region21: #{tpu_custom_call.1} parent=11 // pred_check
          %p193 = pneg %p104
        $region22: #{tpu_custom_call.1} parent=11 // pred_check_branch
          %195 = sbr.rel (%p193) target = $region24
        $region23: #{tpu_custom_call.1} parent=11 // pred_region
          _
        $region24: #{tpu_custom_call.1} parent=11 // pred_fallthru
          _
        // Predicated region
        $region25: #{tpu_custom_call.1} parent=11 // pred_check
          %p196 = pneg %p125
        $region26: #{tpu_custom_call.1} parent=11 // pred_check_branch
          %198 = sbr.rel (%p196) target = $region28
        $region27: #{tpu_custom_call.1} parent=11 // pred_region
          _
        $region28: #{tpu_custom_call.1} parent=11 // pred_fallthru
          _
        // Predicated region
        $region29: #{tpu_custom_call.1} parent=11 // pred_check
          %p199 = pneg %p146
        $region30: #{tpu_custom_call.1} parent=11 // pred_check_branch
          %201 = sbr.rel (%p199) target = $region32
        $region31: #{tpu_custom_call.1} parent=11 // pred_region
          _
        $region32: #{tpu_custom_call.1} parent=11 // pred_fallthru
          _
      $region12: #{tpu_custom_call.1} parent=5 // pred_fallthru
        _
      %p202 = scmp.lt.s32.totalorder %s15, 4
      // Predicated region
      $region33: #{tpu_custom_call.1} parent=5 // pred_check
        %p203 = pneg %p202
      $region34: #{tpu_custom_call.1} parent=5 // pred_check_branch
        %205 = sbr.rel (%p203) target = $region36
      $region35: #{tpu_custom_call.1} parent=5 // pred_region
        // Predicated region
        $region37: #{tpu_custom_call.1} parent=35 // pred_check
          %p206 = pneg %p35
        $region38: #{tpu_custom_call.1} parent=35 // pred_check_branch
          %208 = sbr.rel (%p206) target = $region40
        $region39: #{tpu_custom_call.1} parent=35 // pred_region
          %p209 = scmp.lt.s32.totalorder %s15, 3
          %s210 = scalar_select %p209, %s15, 3
          %s211 = smul.addr %s210, 3
          %s212 = smul.addr %s211, 8
          %s213 = scalar_lea.vmem %s0, %s212
        $region40: #{tpu_custom_call.1} parent=35 // pred_fallthru
          _
      $region36: #{tpu_custom_call.1} parent=5 // pred_fallthru
        _
      %p214 = scmp.le.s32.totalorder 1, %s15
      %p215 = scmp.lt.s32.totalorder %s15, 5
      %p216 = pnand %p214, %p215
      %p217 = pneg %p216
      // Predicated region
      $region41: #{tpu_custom_call.1} parent=5 // pred_check
        _
      $region42: #{tpu_custom_call.1} parent=5 // pred_check_branch
        %219 = sbr.rel (%p216) target = $region44
      $region43: #{tpu_custom_call.1} parent=5 // pred_region
        %s220 = ssub.s32 %s15, 1
        %p221 = scmp.lt.s32.totalorder %s20, 3
        %s222 = scalar_select %p221, %s20, 3
        %s223 = smul.addr %s222, 3
        %s224 = smul.addr %s223, 8
        %s225 = scalar_lea.vmem %s0, %s224
        %p226 = pneg %p41
        %p227 = pneg %p38
        %p228 = pneg %p62
        %p229 = pneg %p59
        %p230 = pneg %p83
        %p231 = pneg %p80
        %p232 = pneg %p104
        %p233 = pneg %p101
        %p234 = pneg %p125
        %p235 = pneg %p122
        %p236 = pneg %p146
        %p237 = pneg %p143
        %p238 = pneg %p172
        %p239 = pneg %p169
        %s240 = sand.u32 %s159, 1
        %s241 = scalar_lea.sflag [#allocation3], %s240
        %s242 = sand.u32 %s159, 1
        %s243 = scalar_lea.vmem [#allocation2], %s242
        %p244 = scmp.lt.s32.totalorder %s20, 3
        %s245 = scalar_select %p244, %s20, 3
        %s246 = smul.addr %s245, 3
        %s247 = smul.addr %s246, 8
        %s248 = scalar_lea.vmem %s0, %s247
        %v249 = vld [vmem:[%s248] sm:$0xff]
        %v250 = vld [vmem:[%s248 + $0x8] sm:$0xff]
        %v251 = vld [vmem:[%s248 + $0x10] sm:$0xf]
        %v252 = vlaneseq
        %v253 = vand.u32 %v252, 127
        %254 = vset.pattern.permute.xlu0 0
        %255 = vperm.xlu0 %254, %v249
        %v256 = vpop.permute.xlu0 %255
        %257 = vset.pattern.permute.xlu0 0
        %258 = vperm.xlu0 %257, %v250
        %v259 = vpop.permute.xlu0 %258
        %260 = vset.pattern.permute.xlu0 0
        %261 = vperm.xlu0 %260, %v251
        %v262 = vpop.permute.xlu0 %261
        %vm263 = vcmp.eq.s32.totalorder %v253, %v256
        %vm264 = vcmp.eq.s32.totalorder %v253, %v259
        %vm265 = vcmp.eq.s32.totalorder %v253, %v262
        %v266 = vsel %vm263, 1, 0
        %v267 = vsel %vm264, 1, 0
        %v268 = vsel %vm265, 1, 0
        %v269 = vcvt.s32.f32 %v266
        %v270 = vcvt.s32.f32 %v267
        %v271 = vcvt.s32.f32 %v268
        %v272 = vld [vmem:[%s1] sm:$0xff]
        %v273 = vld [vmem:[%s1 + $0x8] sm:$0xff]
        %v274 = vld [vmem:[%s1 + $0x10] sm:$0xff]
        %v275 = vld [vmem:[%s1 + $0x18] sm:$0xff]
        %v276 = vld [vmem:[%s1 + $0x20] sm:$0xff]
        %v277 = vld [vmem:[%s1 + $0x28] sm:$0xff]
        %v278 = vld [vmem:[%s1 + $0x30] sm:$0xff]
        %v279 = vld [vmem:[%s1 + $0x38] sm:$0xff]
        %v280 = vld [vmem:[%s1 + $0x40] sm:$0xff]
        %v281 = vld [vmem:[%s1 + $0x48] sm:$0xff]
        %v282 = vld [vmem:[%s1 + $0x50] sm:$0xff]
        %v283 = vld [vmem:[%s1 + $0x58] sm:$0xff]
        %v284 = vld [vmem:[%s1 + $0x60] sm:$0xf]
        %vm285 = vcmask 818176
        %v287 = vsel %vm285, %v269, 0
        %v290 = vsel %vm285, %v270, 0
        %v293 = vsel %vm285, %v271, 0
        %vm295 = vcmask 1043456
        %v297 = vsel %vm295, %v284, 0
        %299 = vmatprep.subr.mxu0 0.0
        %300 = vmatpush1.msra.mxu0 %v272
        %301 = vmatprep.subr.mxu0 0.0
        %302 = vmatpush1.msra.mxu0 %v273
        %303 = vmatprep.subr.mxu0 0.0
        %304 = vmatpush1.msra.mxu0 %v274
        %305 = vmatprep.subr.mxu0 0.0
        %306 = vmatpush1.msra.mxu0 %v275
        %307 = vmatprep.subr.mxu0 0.0
        %308 = vmatpush1.msra.mxu0 %v276
        %309 = vmatprep.subr.mxu0 0.0
        %310 = vmatpush1.msra.mxu0 %v277
        %311 = vmatprep.subr.mxu0 0.0
        %312 = vmatpush1.msra.mxu0 %v278
        %313 = vmatprep.subr.mxu0 0.0
        %314 = vmatpush1.msra.mxu0 %v279
        %315 = vmatprep.subr.mxu0 0.0
        %316 = vmatpush1.msra.mxu0 %v280
        %317 = vmatprep.subr.mxu0 0.0
        %318 = vmatpush1.msra.mxu0 %v281
        %319 = vmatprep.subr.mxu0 0.0
        %320 = vmatpush1.msra.mxu0 %v282
        %321 = vmatprep.subr.mxu0 0.0
        %322 = vmatpush1.msra.mxu0 %v283
        %323 = vmatprep.subr.mxu0 0.0
        %324 = vmatpush1.msra.mxu0 %v297
        %325 = vmatprep.subr.mxu0 0.0
        %326 = vmatpush1.msra.mxu0 0.0
        %327 = vmatprep.subr.mxu0 0.0
        %328 = vmatpush1.msra.mxu0 0.0
        %329 = vmatprep.subr.mxu0 0.0
        %330 = vmatpush1.msra.mxu0 0.0
        %331 = vmatprep.subr.mxu0 0.0
        %332 = vmatpush1.msra.mxu0 0.0
        %333 = vmatprep.subr.mxu0 0.0
        %334 = vmatpush1.msra.mxu0 0.0
        %335 = vmatprep.subr.mxu0 0.0
        %336 = vmatpush1.msra.mxu0 0.0
        %337 = vmatprep.subr.mxu0 0.0
        %338 = vmatpush1.msra.mxu0 0.0
        %339 = vmatprep.subr.mxu0 0.0
        %340 = vmatpush1.msra.mxu0 0.0
        %341 = vmatprep.subr.mxu0 0.0
        %342 = vmatpush1.msra.mxu0 0.0
        %343 = vmatprep.subr.mxu0 0.0
        %344 = vmatpush1.msra.mxu0 0.0
        %345 = vmatprep.subr.mxu0 0.0
        %346 = vmatpush1.msra.mxu0 0.0
        %347 = vmatprep.subr.mxu0 0.0
        %348 = vmatpush1.msra.mxu0 0.0
        %349 = vmatprep.subr.mxu0 0.0
        %350 = vmatpush1.msra.mxu0 0.0
        %351 = vmatprep.subr.mxu0 0.0
        %352 = vmatpush1.msra.mxu0 0.0
        %353 = vmatprep.subr.mxu0 0.0
        %354 = vmatpush1.msra.mxu0 0.0
        %355 = vmatprep.subr.mxu0 0.0
        %356 = vmatpush1.msra.mxu0 0.0
        %357 = vmatprep.subr.mxu0 0.0
        %358 = vmatpush1.msra.mxu0 0.0
        %359 = vmatprep.subr.mxu0 0.0
        %360 = vmatpush1.msra.mxu0 0.0
        %361 = vmatprep.subr.mxu0 0.0
        %362 = vmatpush1.msra.mxu0 0.0
        %363 = vmatprep.mubr.f32.mxu0 0.0
        %364 = vmatmul.mubr.f32.gmra.mrb[0].mxu0 %v287
        %v365 = vpop.f32.mrb[0].mxu0
        %v366 = vadd.f32 0.0, %v365
        %v367 = vpop.f32.mrb[0].mxu0
        %368 = vmatprep.mubr.f32.mxu0 0.0
        %369 = vmatmul.mubr.f32.gmra.mrb[0].mxu0 %v290
        %v370 = vpop.f32.mrb[0].mxu0
        %v371 = vadd.f32 0.0, %v370
        %v372 = vpop.f32.mrb[0].mxu0
        %373 = vmatprep.mubr.f32.mxu0 0.0
        %374 = vmatmul.mubr.f32.gmra.mrb[0].mxu0 %v293
        %v375 = vpop.f32.mrb[0].mxu0
        %v376 = vadd.f32 0.0, %v375
        %v377 = vpop.f32.mrb[0].mxu0
        %378 = vdwg.mxu0
        %vm382 = vcmask 1046528
        %v383 = vrot.slane %v366, 1
        %v384 = vrot.slane %v371, 1
        %v385 = vsel %vm382, %v383, %v384
        %v386 = vrot.slane %v376, 1
        %v387 = vsel %vm382, %v384, %v386
        %388 = vrot.lane.b32.xlu0 %v385, 32
        %v389 = vpop.permute.xlu0 %388
        %390 = vrot.lane.b32.xlu0 %v387, 32
        %v391 = vpop.permute.xlu0 %390
        %392 = vrot.lane.b32.xlu0 %v386, 32
        %v393 = vpop.permute.xlu0 %392
        %vm397 = vcmask 1045504
        %v398 = vrot.slane %v366, 2
        %v399 = vrot.slane %v371, 2
        %v400 = vsel %vm397, %v398, %v399
        %v401 = vrot.slane %v376, 2
        %v402 = vsel %vm397, %v399, %v401
        %403 = vrot.lane.b32.xlu0 %v400, 64
        %v404 = vpop.permute.xlu0 %403
        %405 = vrot.lane.b32.xlu0 %v402, 64
        %v406 = vpop.permute.xlu0 %405
        %407 = vrot.lane.b32.xlu0 %v401, 64
        %v408 = vpop.permute.xlu0 %407
        %vm412 = vcmask 261120
        %v413 = vsel %vm412, %v366, %v389
        %v414 = vsel %vm412, %v371, %v391
        %v415 = vsel %vm412, %v376, %v393
        %vm416 = vcmask 523264
        %v417 = vsel %vm416, %v413, %v404
        %v418 = vsel %vm416, %v414, %v406
        %v419 = vsel %vm416, %v415, %v408
        %v420 = vld [vmem:[%s2] sm:$0xff]
        %v421 = vld [vmem:[%s2 + $0x8] sm:$0xff]
        %v422 = vld [vmem:[%s2 + $0x10] sm:$0xff]
        %v423 = vld [vmem:[%s2 + $0x18] sm:$0xff]
        %v424 = vld [vmem:[%s2 + $0x20] sm:$0xff]
        %v425 = vld [vmem:[%s2 + $0x28] sm:$0xff]
        %v426 = vld [vmem:[%s2 + $0x30] sm:$0xff]
        %v427 = vld [vmem:[%s2 + $0x38] sm:$0xff]
        %v428 = vld [vmem:[%s2 + $0x40] sm:$0xff]
        %v429 = vld [vmem:[%s2 + $0x48] sm:$0xff]
        %v430 = vld [vmem:[%s2 + $0x50] sm:$0xff]
        %v431 = vld [vmem:[%s2 + $0x58] sm:$0xff]
        %vm432 = vcmask 785408
        %v434 = vsel %vm432, %v417, 0
        %v437 = vsel %vm432, %v418, 0
        %v440 = vsel %vm432, %v419, 0
        %442 = vmatprep.subr.mxu0 0.0
        %443 = vmatpush1.msra.mxu0 %v420
        %444 = vmatprep.subr.mxu0 0.0
        %445 = vmatpush1.msra.mxu0 %v421
        %446 = vmatprep.subr.mxu0 0.0
        %447 = vmatpush1.msra.mxu0 %v422
        %448 = vmatprep.subr.mxu0 0.0
        %449 = vmatpush1.msra.mxu0 %v423
        %450 = vmatprep.subr.mxu0 0.0
        %451 = vmatpush1.msra.mxu0 %v424
        %452 = vmatprep.subr.mxu0 0.0
        %453 = vmatpush1.msra.mxu0 %v425
        %454 = vmatprep.subr.mxu0 0.0
        %455 = vmatpush1.msra.mxu0 %v426
        %456 = vmatprep.subr.mxu0 0.0
        %457 = vmatpush1.msra.mxu0 %v427
        %458 = vmatprep.subr.mxu0 0.0
        %459 = vmatpush1.msra.mxu0 %v428
        %460 = vmatprep.subr.mxu0 0.0
        %461 = vmatpush1.msra.mxu0 %v429
        %462 = vmatprep.subr.mxu0 0.0
        %463 = vmatpush1.msra.mxu0 %v430
        %464 = vmatprep.subr.mxu0 0.0
        %465 = vmatpush1.msra.mxu0 %v431
        %466 = vmatprep.subr.mxu0 0.0
        %467 = vmatpush1.msra.mxu0 0.0
        %468 = vmatprep.subr.mxu0 0.0
        %469 = vmatpush1.msra.mxu0 0.0
        %470 = vmatprep.subr.mxu0 0.0
        %471 = vmatpush1.msra.mxu0 0.0
        %472 = vmatprep.subr.mxu0 0.0
        %473 = vmatpush1.msra.mxu0 0.0
        %474 = vmatprep.subr.mxu0 0.0
        %475 = vmatpush1.msra.mxu0 0.0
        %476 = vmatprep.subr.mxu0 0.0
        %477 = vmatpush1.msra.mxu0 0.0
        %478 = vmatprep.subr.mxu0 0.0
        %479 = vmatpush1.msra.mxu0 0.0
        %480 = vmatprep.subr.mxu0 0.0
        %481 = vmatpush1.msra.mxu0 0.0
        %482 = vmatprep.subr.mxu0 0.0
        %483 = vmatpush1.msra.mxu0 0.0
        %484 = vmatprep.subr.mxu0 0.0
        %485 = vmatpush1.msra.mxu0 0.0
        %486 = vmatprep.subr.mxu0 0.0
        %487 = vmatpush1.msra.mxu0 0.0
        %488 = vmatprep.subr.mxu0 0.0
        %489 = vmatpush1.msra.mxu0 0.0
        %490 = vmatprep.subr.mxu0 0.0
        %491 = vmatpush1.msra.mxu0 0.0
        %492 = vmatprep.subr.mxu0 0.0
        %493 = vmatpush1.msra.mxu0 0.0
        %494 = vmatprep.subr.mxu0 0.0
        %495 = vmatpush1.msra.mxu0 0.0
        %496 = vmatprep.subr.mxu0 0.0
        %497 = vmatpush1.msra.mxu0 0.0
        %498 = vmatprep.subr.mxu0 0.0
        %499 = vmatpush1.msra.mxu0 0.0
        %500 = vmatprep.subr.mxu0 0.0
        %501 = vmatpush1.msra.mxu0 0.0
        %502 = vmatprep.subr.mxu0 0.0
        %503 = vmatpush1.msra.mxu0 0.0
        %504 = vmatprep.subr.mxu0 0.0
        %505 = vmatpush1.msra.mxu0 0.0
        %506 = vmatprep.mubr.f32.mxu0 0.0
        %507 = vmatmul.mubr.f32.gmra.mrb[0].mxu0 %v434
        %v508 = vpop.f32.mrb[0].mxu0
        %v509 = vadd.f32 0.0, %v508
        %v510 = vpop.f32.mrb[0].mxu0
        %511 = vmatprep.mubr.f32.mxu0 0.0
        %512 = vmatmul.mubr.f32.gmra.mrb[0].mxu0 %v437
        %v513 = vpop.f32.mrb[0].mxu0
        %v514 = vadd.f32 0.0, %v513
        %v515 = vpop.f32.mrb[0].mxu0
        %516 = vmatprep.mubr.f32.mxu0 0.0
        %517 = vmatmul.mubr.f32.gmra.mrb[0].mxu0 %v440
        %v518 = vpop.f32.mrb[0].mxu0
        %v519 = vadd.f32 0.0, %v518
        %v520 = vpop.f32.mrb[0].mxu0
        %521 = vdwg.mxu0
        %vm522 = vcmask 130048
        %v523 = vsel %vm522, %v509, -inf
        %v524 = vsel %vm522, %v514, -inf
        %vm525 = vcmask 123904
        %v526 = vsel %vm525, %v519, -inf
        %v527 = vmax.f32 %v523, %v524
        %v528 = vmax.f32 %v527, %v526
        %v529 = vrot.slane %v528, 4
        %v530 = vmax.f32 %v528, %v529
        %v531 = vrot.slane %v530, 2
        %v532 = vmax.f32 %v530, %v531
        %v533 = vrot.slane %v532, 1
        %v534 = vmax.f32 %v532, %v533
        %v535 = vld [vmem:[%s3] sm:$0x1]
        %v536 = vadd.f32 %v534, %v535
        %v537 = vmax.f32 %v536, 0.0
        %v538 = vld [vmem:[%s4] sm:$0xff]
        %v539 = vld [vmem:[%s4 + $0x8] sm:$0xff]
        %v540 = vld [vmem:[%s5] sm:$0x1]
        %v542 = vsel %vm522, %v537, 0
        %544 = vmatprep.subr.mxu0 0.0
        %545 = vmatpush1.msra.mxu0 %v538
        %546 = vmatprep.subr.mxu0 0.0
        %547 = vmatpush1.msra.mxu0 %v539
        %548 = vmatprep.subr.mxu0 0.0
        %549 = vmatpush1.msra.mxu0 0.0
        %550 = vmatprep.subr.mxu0 0.0
        %551 = vmatpush1.msra.mxu0 0.0
        %552 = vmatprep.subr.mxu0 0.0
        %553 = vmatpush1.msra.mxu0 0.0
        %554 = vmatprep.subr.mxu0 0.0
        %555 = vmatpush1.msra.mxu0 0.0
        %556 = vmatprep.subr.mxu0 0.0
        %557 = vmatpush1.msra.mxu0 0.0
        %558 = vmatprep.subr.mxu0 0.0
        %559 = vmatpush1.msra.mxu0 0.0
        %560 = vmatprep.subr.mxu0 0.0
        %561 = vmatpush1.msra.mxu0 0.0
        %562 = vmatprep.subr.mxu0 0.0
        %563 = vmatpush1.msra.mxu0 0.0
        %564 = vmatprep.subr.mxu0 0.0
        %565 = vmatpush1.msra.mxu0 0.0
        %566 = vmatprep.subr.mxu0 0.0
        %567 = vmatpush1.msra.mxu0 0.0
        %568 = vmatprep.subr.mxu0 0.0
        %569 = vmatpush1.msra.mxu0 0.0
        %570 = vmatprep.subr.mxu0 0.0
        %571 = vmatpush1.msra.mxu0 0.0
        %572 = vmatprep.subr.mxu0 0.0
        %573 = vmatpush1.msra.mxu0 0.0
        %574 = vmatprep.subr.mxu0 0.0
        %575 = vmatpush1.msra.mxu0 0.0
        %576 = vmatprep.subr.mxu0 0.0
        %577 = vmatpush1.msra.mxu0 0.0
        %578 = vmatprep.subr.mxu0 0.0
        %579 = vmatpush1.msra.mxu0 0.0
        %580 = vmatprep.subr.mxu0 0.0
        %581 = vmatpush1.msra.mxu0 0.0
        %582 = vmatprep.subr.mxu0 0.0
        %583 = vmatpush1.msra.mxu0 0.0
        %584 = vmatprep.subr.mxu0 0.0
        %585 = vmatpush1.msra.mxu0 0.0
        %586 = vmatprep.subr.mxu0 0.0
        %587 = vmatpush1.msra.mxu0 0.0
        %588 = vmatprep.subr.mxu0 0.0
        %589 = vmatpush1.msra.mxu0 0.0
        %590 = vmatprep.subr.mxu0 0.0
        %591 = vmatpush1.msra.mxu0 0.0
        %592 = vmatprep.subr.mxu0 0.0
        %593 = vmatpush1.msra.mxu0 0.0
        %594 = vmatprep.subr.mxu0 0.0
        %595 = vmatpush1.msra.mxu0 0.0
        %596 = vmatprep.subr.mxu0 0.0
        %597 = vmatpush1.msra.mxu0 0.0
        %598 = vmatprep.subr.mxu0 0.0
        %599 = vmatpush1.msra.mxu0 0.0
        %600 = vmatprep.subr.mxu0 0.0
        %601 = vmatpush1.msra.mxu0 0.0
        %602 = vmatprep.subr.mxu0 0.0
        %603 = vmatpush1.msra.mxu0 0.0
        %604 = vmatprep.subr.mxu0 0.0
        %605 = vmatpush1.msra.mxu0 0.0
        %606 = vmatprep.subr.mxu0 0.0
        %607 = vmatpush1.msra.mxu0 0.0
        %608 = vmatprep.mubr.f32.mxu0 0.0
        %609 = vmatmul.mubr.f32.gmra.mrb[0].mxu0 %v542
        %v610 = vpop.f32.mrb[0].mxu0
        %v611 = vadd.f32 %v540, %v610
        %v612 = vpop.f32.mrb[0].mxu0
        %613 = vdwg.mxu0
        %614 = vst [vmem:[%s243] sm:$0x1] %v611
        %s615 = sand.u32 %s159, 1
        %s616 = scalar_lea.sflag [#allocation3], %s615
        %s617 = sand.u32 %s159, 1
        %s618 = scalar_lea.vmem [#allocation2], %s617
        // Predicated region
        $region45: #{tpu_custom_call.1} parent=43 // pred_check
          %p619 = pneg %p169
        $region46: #{tpu_custom_call.1} parent=43 // pred_check_branch
          %621 = sbr.rel (%p619) target = $region48
        $region47: #{tpu_custom_call.1} parent=43 // pred_region
          %s623 = ssub.s32 16, 16
          %624 = vsyncadd %s616, %s623
          %s625 = smul.addr %s20, 16
          %s626 = scalar_lea.hbm %s6, %s625
          %s628 = sshll.u32 %s618, 4
          %s629 = int_to_ptr.vmem [resolvable:$true] %s628
          %631 = dma.vmem_to_hbm [thread:$0]  %s629, 16, %s626, %s616
        $region48: #{tpu_custom_call.1} parent=43 // pred_fallthru
          _
      $region44: #{tpu_custom_call.1} parent=5 // pred_fallthru
        _
      %p632 = scmp.le.s32.totalorder 2, %s15
      // Predicated region
      $region49: #{tpu_custom_call.1} parent=5 // pred_check
        %p633 = pneg %p632
      $region50: #{tpu_custom_call.1} parent=5 // pred_check_branch
        %635 = sbr.rel (%p633) target = $region52
      $region51: #{tpu_custom_call.1} parent=5 // pred_region
        %s636 = ssub.s32 %s15, 2
        // Predicated region
        $region53: #{tpu_custom_call.1} parent=51 // pred_check
          %p637 = pneg %p175
        $region54: #{tpu_custom_call.1} parent=51 // pred_check_branch
          %639 = sbr.rel (%p637) target = $region56
        $region55: #{tpu_custom_call.1} parent=51 // pred_region
          %s640 = sand.u32 %s160, 1
          %s641 = scalar_lea.sflag [#allocation3], %s640
          %s642 = sand.u32 %s160, 1
          %s643 = scalar_lea.vmem [#allocation2], %s642
          %644 = dma.done %s641, 16
        $region56: #{tpu_custom_call.1} parent=51 // pred_fallthru
          _
      $region52: #{tpu_custom_call.1} parent=5 // pred_fallthru
        _
    $region6: #{tpu_custom_call.1} parent=1 // loop_footer
      %s19 = sadd.s32 1, %s15
    $region7: #{tpu_custom_call.1} parent=1 // loop_footer_branch
      %14 = sbr.rel target = $region3
    $region8: #{tpu_custom_call.1} parent=1 // loop_exit
      _
    %645 = vsyncpa [#allocation3], 1
    %s646 = scalar_lea.sflag [#allocation3], 1
    %647 = vsyncpa %s646, 1

</llo_original>
